<compile_context>
chip_gen: v6e
topology: v6e:2x2x1
jax: 0.10.0
libtpu: 0.0.40
codegen_flags: <defaults>
</compile_context>

<pallas_src>
import math
import functools

import jax
import jax.numpy as jnp
from jax import lax
from jax.experimental import pallas as pl
from jax.experimental.pallas import tpu as pltpu


def _choose_tile(seq_len, max_tile=256):
    """Largest multiple-of-8 divisor of seq_len (<= max_tile); else seq_len."""
    best = None
    t = 8
    while t <= min(seq_len, max_tile):
        if seq_len % t == 0:
            best = t
        t += 8
    return best if best is not None else seq_len


def _embeddings_kernel(ids_ref, emb_ref, pe_ref, *rest,
                       tile, seq_len, scale, use_mask):
    """One grid step = one (batch b, sequence-tile j) slab of `tile` tokens.

    ids_ref  : (B*S,)            int32, SMEM (scalar prefetch)
    emb_ref  : (vocab, d_model)  f32, VMEM-resident (same block every step)
    pe_ref   : (tile, d_model)   f32
    mask_ref : (tile, d_model)   f32 keep-scale (only when use_mask)
    out_ref  : (tile, d_model)   f32
    """
    if use_mask:
        mask_ref, out_ref = rest
    else:
        (out_ref,) = rest

    b = pl.program_id(0)
    j = pl.program_id(1)
    base = b * seq_len + j * tile

    # Gather the `tile` embedding rows for this slab directly into the output
    # VMEM block; the dense elementwise math then runs on the whole slab.
    def gather_row(t, carry):
        tok = ids_ref[base + t]
        out_ref[pl.ds(t, 1), :] = emb_ref[pl.ds(tok, 1), :]
        return carry

    lax.fori_loop(0, tile, gather_row, 0, unroll=min(tile, 8))

    x = out_ref[...] * jnp.float32(scale) + pe_ref[...]
    if use_mask:
        x = x * mask_ref[...]
    out_ref[...] = x


def embeddings_forward(ids, embed_table, pe, *, dropout_p=0.1, training=True,
                       rng_key=None):
    """ids (B, S) int -> (B, S, d_model) f32 = dropout(embed(ids)*sqrt(d)+pe[:S])."""
    B, S = ids.shape
    vocab, d_model = embed_table.shape
    ids = ids.astype(jnp.int32)
    embed_table = embed_table.astype(jnp.float32)
    pe = pe.astype(jnp.float32)

    use_mask = bool(training) and float(dropout_p) > 0.0
    if use_mask and float(dropout_p) >= 1.0:
        # torch nn.Dropout(p=1) zeroes everything in training mode.
        return jnp.zeros((B, S, d_model), jnp.float32)

    tile = _choose_tile(S)
    grid = (B, S // tile)
    scale = math.sqrt(d_model)

    in_specs = [
        # Embedding table stays resident in VMEM (constant block index ->
        # fetched once, reused every grid step).
        # TODO(synk): for vocab tables too large for VMEM, switch to
        # memory_space=pl.ANY + a manual double-buffered per-row DMA gather.
        pl.BlockSpec((vocab, d_model), lambda b, j, ids_ref: (0, 0)),
        # Positional-encoding slab for this sequence tile.
        pl.BlockSpec((tile, d_model), lambda b, j, ids_ref: (j, 0)),
    ]
    inputs = [embed_table, pe]

    if use_mask:
        # TODO(synk): dropout keep-mask is drawn host-side with jax.random
        # (portable / interpret-safe) instead of the in-kernel TPU hardware
        # PRNG; it is a valid Bernoulli(1-p) dropout but not torch's RNG stream.
        if rng_key is None:
            rng_key = jax.random.PRNGKey(0)
        keep = jax.random.bernoulli(rng_key, 1.0 - float(dropout_p),
                                    (B, S, d_model))
        mask = keep.astype(jnp.float32) / jnp.float32(1.0 - float(dropout_p))
        in_specs.append(
            pl.BlockSpec((None, tile, d_model), lambda b, j, ids_ref: (b, j, 0)))
        inputs.append(mask)

    kernel = functools.partial(_embeddings_kernel, tile=tile, seq_len=S,
                               scale=scale, use_mask=use_mask)

    grid_spec = pltpu.PrefetchScalarGridSpec(
        num_scalar_prefetch=1,                 # flat token ids live in SMEM
        grid=grid,
        in_specs=in_specs,
        out_specs=pl.BlockSpec((None, tile, d_model),
                               lambda b, j, ids_ref: (b, j, 0)),
    )

    return pl.pallas_call(
        kernel,
        grid_spec=grid_spec,
        out_shape=jax.ShapeDtypeStruct((B, S, d_model), jnp.float32),
        compiler_params=pltpu.CompilerParams(
            dimension_semantics=("parallel", "parallel")),
    )(ids.reshape(-1), *inputs)


def create_positional_encoding(max_len, d_model):
    """Exact vectorized replica of the PyTorch double loop:
       even column c -> sin(pos / 10000**(2c/d_model))
       odd  column c -> cos(pos / 10000**(2c/d_model))"""
    pos = jnp.arange(max_len, dtype=jnp.float32)[:, None]        # (L, 1)
    col = jnp.arange(d_model, dtype=jnp.float32)[None, :]        # (1, D)
    angles = pos / jnp.power(jnp.float32(10000.0), 2.0 * col / d_model)
    is_even = (jnp.arange(d_model) % 2 == 0)[None, :]
    return jnp.where(is_even, jnp.sin(angles), jnp.cos(angles))  # (L, D)


if __name__ == "__main__":
    # Small deterministic setup
    vocab_size = 50
    d_model = 128
    max_len = 16
    B, S = 2, 8

    key = jax.random.PRNGKey(0)
    k_emb, k_ids, k_drop = jax.random.split(key, 3)

    # nn.Embedding default init: N(0, 1)
    embed_table = jax.random.normal(k_emb, (vocab_size, d_model),
                                    dtype=jnp.float32)
    pe = create_positional_encoding(max_len, d_model)
    ids = jax.random.randint(k_ids, (B, S), 0, vocab_size, dtype=jnp.int32)

    # training-mode forward (with dropout)
    out_train = jax.block_until_ready(
        embeddings_forward(ids, embed_table, pe, dropout_p=0.1, training=True,
                           rng_key=k_drop))
    assert out_train.shape == (B, S, d_model)
    assert bool(jnp.all(jnp.isfinite(out_train)))

    # eval-mode forward vs pure-JAX reference
    out_eval = jax.block_until_ready(
        embeddings_forward(ids, embed_table, pe, dropout_p=0.1, training=False))
    ref = embed_table[ids] * math.sqrt(d_model) + pe[None, :S]
    assert jnp.allclose(out_eval, ref, atol=1e-5, rtol=1e-5)

    print("KERNEL_OK")
</pallas_src>

<mosaic_0001>
module attributes {stable_mosaic.version = 11 : i64} {
  func.func @_embeddings_kernel(%arg0: i32, %arg1: i32, %arg2: memref<16xi32, #tpu.memory_space<smem>>, %arg3: memref<50x128xf32, #tpu.memory_space<vmem>>, %arg4: memref<8x128xf32, #tpu.memory_space<vmem>>, %arg5: memref<1x8x128xf32, #tpu.memory_space<vmem>>, %arg6: memref<1x8x128xf32, #tpu.memory_space<vmem>>) attributes {dimension_semantics = [#tpu.dimension_semantics<parallel>, #tpu.dimension_semantics<parallel>], iteration_bounds = array<i64: 2, 1>, scalar_prefetch = 1 : i64, scratch_operands = 0 : i64, tpu.core_type = #tpu.core_type<tc>, window_params = [{pipeline_mode = #tpu.pipeline_mode<synchronous>, transform_indices = @transform_0, window_bounds = array<i64: 50, 128>}, {transform_indices = @transform_1, window_bounds = array<i64: 8, 128>}, {transform_indices = @transform_2, window_bounds = array<i64: 1, 8, 128>}, {transform_indices = @transform_3, window_bounds = array<i64: 1, 8, 128>}]} {
    %c8_i32 = arith.constant 8 : i32
    %0 = arith.muli %arg0, %c8_i32 : i32
    %c8_i32_0 = arith.constant 8 : i32
    %1 = arith.muli %arg1, %c8_i32_0 : i32
    %2 = arith.addi %0, %1 : i32
    %c0_i32 = arith.constant 0 : i32
    %3 = arith.addi %2, %c0_i32 : i32
    %4 = arith.index_cast %3 : i32 to index
    %5 = memref.load %arg2[%4] : memref<16xi32, #tpu.memory_space<smem>>
    %6 = arith.index_cast %5 : i32 to index
    %c0 = arith.constant 0 : index
    %7 = vector.load %arg3[%6, %c0] : memref<50x128xf32, #tpu.memory_space<vmem>>, vector<1x128xf32>
    %c0_1 = arith.constant 0 : index
    %8 = arith.index_cast %c0_i32 : i32 to index
    %c0_2 = arith.constant 0 : index
    %9 = vector.load %arg6[%c0_1, %8, %c0_2] : memref<1x8x128xf32, #tpu.memory_space<vmem>>, vector<1x1x128xf32>
    %10 = vector.shape_cast %9 : vector<1x1x128xf32> to vector<1x128xf32>
    %11 = vector.shape_cast %7 : vector<1x128xf32> to vector<1x1x128xf32>
    tpu.vector_store %arg6[%c0_1, %8, %c0_2], %11 {strides = array<i32>} : memref<1x8x128xf32, #tpu.memory_space<vmem>>, vector<1x1x128xf32>,
    %c1_i32 = arith.constant 1 : i32
    %12 = arith.addi %2, %c1_i32 : i32
    %13 = arith.index_cast %12 : i32 to index
    %14 = memref.load %arg2[%13] : memref<16xi32, #tpu.memory_space<smem>>
    %15 = arith.index_cast %14 : i32 to index
    %c0_3 = arith.constant 0 : index
    %16 = vector.load %arg3[%15, %c0_3] : memref<50x128xf32, #tpu.memory_space<vmem>>, vector<1x128xf32>
    %c0_4 = arith.constant 0 : index
    %17 = arith.index_cast %c1_i32 : i32 to index
    %c0_5 = arith.constant 0 : index
    %18 = vector.load %arg6[%c0_4, %17, %c0_5] : memref<1x8x128xf32, #tpu.memory_space<vmem>>, vector<1x1x128xf32>
    %19 = vector.shape_cast %18 : vector<1x1x128xf32> to vector<1x128xf32>
    %20 = vector.shape_cast %16 : vector<1x128xf32> to vector<1x1x128xf32>
    tpu.vector_store %arg6[%c0_4, %17, %c0_5], %20 {strides = array<i32>} : memref<1x8x128xf32, #tpu.memory_space<vmem>>, vector<1x1x128xf32>,
    %c2_i32 = arith.constant 2 : i32
    %21 = arith.addi %2, %c2_i32 : i32
    %22 = arith.index_cast %21 : i32 to index
    %23 = memref.load %arg2[%22] : memref<16xi32, #tpu.memory_space<smem>>
    %24 = arith.index_cast %23 : i32 to index
    %c0_6 = arith.constant 0 : index
    %25 = vector.load %arg3[%24, %c0_6] : memref<50x128xf32, #tpu.memory_space<vmem>>, vector<1x128xf32>
    %c0_7 = arith.constant 0 : index
    %26 = arith.index_cast %c2_i32 : i32 to index
    %c0_8 = arith.constant 0 : index
    %27 = vector.load %arg6[%c0_7, %26, %c0_8] : memref<1x8x128xf32, #tpu.memory_space<vmem>>, vector<1x1x128xf32>
    %28 = vector.shape_cast %27 : vector<1x1x128xf32> to vector<1x128xf32>
    %29 = vector.shape_cast %25 : vector<1x128xf32> to vector<1x1x128xf32>
    tpu.vector_store %arg6[%c0_7, %26, %c0_8], %29 {strides = array<i32>} : memref<1x8x128xf32, #tpu.memory_space<vmem>>, vector<1x1x128xf32>,
    %c3_i32 = arith.constant 3 : i32
    %30 = arith.addi %2, %c3_i32 : i32
    %31 = arith.index_cast %30 : i32 to index
    %32 = memref.load %arg2[%31] : memref<16xi32, #tpu.memory_space<smem>>
    %33 = arith.index_cast %32 : i32 to index
    %c0_9 = arith.constant 0 : index
    %34 = vector.load %arg3[%33, %c0_9] : memref<50x128xf32, #tpu.memory_space<vmem>>, vector<1x128xf32>
    %c0_10 = arith.constant 0 : index
    %35 = arith.index_cast %c3_i32 : i32 to index
    %c0_11 = arith.constant 0 : index
    %36 = vector.load %arg6[%c0_10, %35, %c0_11] : memref<1x8x128xf32, #tpu.memory_space<vmem>>, vector<1x1x128xf32>
    %37 = vector.shape_cast %36 : vector<1x1x128xf32> to vector<1x128xf32>
    %38 = vector.shape_cast %34 : vector<1x128xf32> to vector<1x1x128xf32>
    tpu.vector_store %arg6[%c0_10, %35, %c0_11], %38 {strides = array<i32>} : memref<1x8x128xf32, #tpu.memory_space<vmem>>, vector<1x1x128xf32>,
    %c4_i32 = arith.constant 4 : i32
    %39 = arith.addi %2, %c4_i32 : i32
    %40 = arith.index_cast %39 : i32 to index
    %41 = memref.load %arg2[%40] : memref<16xi32, #tpu.memory_space<smem>>
    %42 = arith.index_cast %41 : i32 to index
    %c0_12 = arith.constant 0 : index
    %43 = vector.load %arg3[%42, %c0_12] : memref<50x128xf32, #tpu.memory_space<vmem>>, vector<1x128xf32>
    %c0_13 = arith.constant 0 : index
    %44 = arith.index_cast %c4_i32 : i32 to index
    %c0_14 = arith.constant 0 : index
    %45 = vector.load %arg6[%c0_13, %44, %c0_14] : memref<1x8x128xf32, #tpu.memory_space<vmem>>, vector<1x1x128xf32>
    %46 = vector.shape_cast %45 : vector<1x1x128xf32> to vector<1x128xf32>
    %47 = vector.shape_cast %43 : vector<1x128xf32> to vector<1x1x128xf32>
    tpu.vector_store %arg6[%c0_13, %44, %c0_14], %47 {strides = array<i32>} : memref<1x8x128xf32, #tpu.memory_space<vmem>>, vector<1x1x128xf32>,
    %c5_i32 = arith.constant 5 : i32
    %48 = arith.addi %2, %c5_i32 : i32
    %49 = arith.index_cast %48 : i32 to index
    %50 = memref.load %arg2[%49] : memref<16xi32, #tpu.memory_space<smem>>
    %51 = arith.index_cast %50 : i32 to index
    %c0_15 = arith.constant 0 : index
    %52 = vector.load %arg3[%51, %c0_15] : memref<50x128xf32, #tpu.memory_space<vmem>>, vector<1x128xf32>
    %c0_16 = arith.constant 0 : index
    %53 = arith.index_cast %c5_i32 : i32 to index
    %c0_17 = arith.constant 0 : index
    %54 = vector.load %arg6[%c0_16, %53, %c0_17] : memref<1x8x128xf32, #tpu.memory_space<vmem>>, vector<1x1x128xf32>
    %55 = vector.shape_cast %54 : vector<1x1x128xf32> to vector<1x128xf32>
    %56 = vector.shape_cast %52 : vector<1x128xf32> to vector<1x1x128xf32>
    tpu.vector_store %arg6[%c0_16, %53, %c0_17], %56 {strides = array<i32>} : memref<1x8x128xf32, #tpu.memory_space<vmem>>, vector<1x1x128xf32>,
    %c6_i32 = arith.constant 6 : i32
    %57 = arith.addi %2, %c6_i32 : i32
    %58 = arith.index_cast %57 : i32 to index
    %59 = memref.load %arg2[%58] : memref<16xi32, #tpu.memory_space<smem>>
    %60 = arith.index_cast %59 : i32 to index
    %c0_18 = arith.constant 0 : index
    %61 = vector.load %arg3[%60, %c0_18] : memref<50x128xf32, #tpu.memory_space<vmem>>, vector<1x128xf32>
    %c0_19 = arith.constant 0 : index
    %62 = arith.index_cast %c6_i32 : i32 to index
    %c0_20 = arith.constant 0 : index
    %63 = vector.load %arg6[%c0_19, %62, %c0_20] : memref<1x8x128xf32, #tpu.memory_space<vmem>>, vector<1x1x128xf32>
    %64 = vector.shape_cast %63 : vector<1x1x128xf32> to vector<1x128xf32>
    %65 = vector.shape_cast %61 : vector<1x128xf32> to vector<1x1x128xf32>
    tpu.vector_store %arg6[%c0_19, %62, %c0_20], %65 {strides = array<i32>} : memref<1x8x128xf32, #tpu.memory_space<vmem>>, vector<1x1x128xf32>,
    %c7_i32 = arith.constant 7 : i32
    %66 = arith.addi %2, %c7_i32 : i32
    %67 = arith.index_cast %66 : i32 to index
    %68 = memref.load %arg2[%67] : memref<16xi32, #tpu.memory_space<smem>>
    %69 = arith.index_cast %68 : i32 to index
    %c0_21 = arith.constant 0 : index
    %70 = vector.load %arg3[%69, %c0_21] : memref<50x128xf32, #tpu.memory_space<vmem>>, vector<1x128xf32>
    %c0_22 = arith.constant 0 : index
    %71 = arith.index_cast %c7_i32 : i32 to index
    %c0_23 = arith.constant 0 : index
    %72 = vector.load %arg6[%c0_22, %71, %c0_23] : memref<1x8x128xf32, #tpu.memory_space<vmem>>, vector<1x1x128xf32>
    %73 = vector.shape_cast %72 : vector<1x1x128xf32> to vector<1x128xf32>
    %74 = vector.shape_cast %70 : vector<1x128xf32> to vector<1x1x128xf32>
    tpu.vector_store %arg6[%c0_22, %71, %c0_23], %74 {strides = array<i32>} : memref<1x8x128xf32, #tpu.memory_space<vmem>>, vector<1x1x128xf32>,
    %c8_i32_24 = arith.constant 8 : i32
    %c0_25 = arith.constant 0 : index
    %c0_26 = arith.constant 0 : index
    %c0_27 = arith.constant 0 : index
    %75 = vector.load %arg6[%c0_25, %c0_26, %c0_27] : memref<1x8x128xf32, #tpu.memory_space<vmem>>, vector<1x8x128xf32>
    %76 = vector.shape_cast %75 : vector<1x8x128xf32> to vector<8x128xf32>
    %cst = arith.constant 11.3137083 : f32
    %77 = vector.broadcast %cst : f32 to vector<8x128xf32>
    %78 = arith.mulf %76, %77 : vector<8x128xf32>
    %c0_28 = arith.constant 0 : index
    %c0_29 = arith.constant 0 : index
    %79 = vector.load %arg4[%c0_28, %c0_29] : memref<8x128xf32, #tpu.memory_space<vmem>>, vector<8x128xf32>
    %80 = arith.addf %78, %79 : vector<8x128xf32>
    %c0_30 = arith.constant 0 : index
    %c0_31 = arith.constant 0 : index
    %c0_32 = arith.constant 0 : index
    %81 = vector.load %arg5[%c0_30, %c0_31, %c0_32] : memref<1x8x128xf32, #tpu.memory_space<vmem>>, vector<1x8x128xf32>
    %82 = vector.shape_cast %81 : vector<1x8x128xf32> to vector<8x128xf32>
    %83 = arith.mulf %80, %82 : vector<8x128xf32>
    %c0_33 = arith.constant 0 : index
    %c0_34 = arith.constant 0 : index
    %c0_35 = arith.constant 0 : index
    %84 = vector.load %arg6[%c0_33, %c0_34, %c0_35] : memref<1x8x128xf32, #tpu.memory_space<vmem>>, vector<1x8x128xf32>
    %85 = vector.shape_cast %84 : vector<1x8x128xf32> to vector<8x128xf32>
    %86 = vector.shape_cast %83 : vector<8x128xf32> to vector<1x8x128xf32>
    tpu.vector_store %arg6[%c0_33, %c0_34, %c0_35], %86 {strides = array<i32>} : memref<1x8x128xf32, #tpu.memory_space<vmem>>, vector<1x8x128xf32>,
    return
  }
  func.func @transform_0(%arg0: i32, %arg1: i32, %arg2: memref<16xi32, #tpu.memory_space<smem>>) -> (i32, i32) {
    %c0_i32 = arith.constant 0 : i32
    %c0_i32_0 = arith.constant 0 : i32
    %c0_i32_1 = arith.constant 0 : i32
    return %c0_i32, %c0_i32_0 : i32, i32
  }
  func.func @transform_1(%arg0: i32, %arg1: i32, %arg2: memref<16xi32, #tpu.memory_space<smem>>) -> (i32, i32) {
    %c0_i32 = arith.constant 0 : i32
    %c0_i32_0 = arith.constant 0 : i32
    return %arg1, %c0_i32 : i32, i32
  }
  func.func @transform_2(%arg0: i32, %arg1: i32, %arg2: memref<16xi32, #tpu.memory_space<smem>>) -> (i32, i32, i32) {
    %c0_i32 = arith.constant 0 : i32
    %c0_i32_0 = arith.constant 0 : i32
    return %arg0, %arg1, %c0_i32 : i32, i32, i32
  }
  func.func @transform_3(%arg0: i32, %arg1: i32, %arg2: memref<16xi32, #tpu.memory_space<smem>>) -> (i32, i32, i32) {
    %c0_i32 = arith.constant 0 : i32
    %c0_i32_0 = arith.constant 0 : i32
    return %arg0, %arg1, %c0_i32 : i32, i32, i32
  }
}

</mosaic_0001>

<llo_original>
// kernel: tpu_custom_call.1
$region0: #{tpu_custom_call.1}
  #allocation0 [shape = 'u32[]', space=smem, size = 0x4, offset = 0x4, fixed_abs, tag = 'smem constant byte address 0x4 - core index']
  #allocation1 [shape = 'u32[144,128]{1,0:T(1,128)}', space=vmem, size = 0x12000, scoped, tag = 'internal scratch']
  #allocation2 [shape = 's32[1]{0}', space=sflag, size = 0x4, scoped, tag = 'scoped memory for tpu_custom_call.1']
  #allocation3 [shape = 'u8[512]{0}', space=smem, size = 0x200, scoped, tag = 'prefetched SMEM operand 0']
  %s0 = inlined_call_operand.hbm [shape: s32[16], index: 0, kind: input, shape index: {}]
  %s1 = inlined_call_operand.hbm [shape: f32[50,128], index: 1, kind: input, shape index: {}]
  %s2 = inlined_call_operand.hbm [shape: f32[16,128], index: 2, kind: input, shape index: {}]
  %s3 = inlined_call_operand.hbm [shape: f32[2,8,128], index: 3, kind: input, shape index: {}]
  %s4 = inlined_call_operand.hbm [shape: f32[2,8,128], index: 4, kind: output, shape index: {}]
  %s5 = sld [smem:[#allocation0]]
  $region57: #{tpu_custom_call.1} parent=0
    _
  %s7 = ssub.s32 1, %s5
  %s8 = scalar_select 0, %s7, %s5
  %10 = dma.hbm_to_smem %s0, 16, [#allocation3], [#allocation2]
  %11 = dma.done [#allocation2], 16
  %12 = sfence
  $region1: #{tpu_custom_call.1} parent=0
    #allocation4 [shape = 'u8[28672]{0}', space=vmem, size = 0x7000, scoped, tag = 'input window, operand 1, single buffered']
    #allocation5 [shape = 's32[2]{0}', space=sflag, size = 0x8, scoped, tag = 'scoped memory for tpu_custom_call.1']
    #allocation6 [shape = 's32[2]{0}', space=sflag, size = 0x8, scoped, tag = 'scoped memory for tpu_custom_call.1']
    #allocation7 [shape = 'u8[4096]{0}', space=vmem, size = 0x1000, scoped, tag = 'input window, operand 2, single buffered']
    #allocation8 [shape = 's32[1]{0}', space=sflag, size = 0x4, scoped, tag = 'scoped memory for tpu_custom_call.1']
    #allocation9 [shape = 'u8[8192]{0}', space=vmem, size = 0x2000, scoped, tag = 'input window, operand 3']
    #allocation10 [shape = 'u8[8192]{0}', space=vmem, size = 0x2000, scoped, tag = 'output window, operand 0']
    %13 = vsyncpa [#allocation5], 0
    %14 = vsyncpa [#allocation8], 0
    %15 = vsyncpa [#allocation6], 0
    %s16 = scalar_lea.sflag [#allocation6], 1
    %17 = vsyncpa %s16, 0
    loop: start=0, step=1, limit=4
    $region2: #{tpu_custom_call.1} parent=1 // loop_pre_header
      _
    $region3: #{tpu_custom_call.1} parent=1 // loop_header
      %s19 = sphi 0, %s23
      %p20 = scmp.ge.s32.totalorder %s19, 4
      %s26 = sphi 0, %s38
      %s27 = sphi 0, %s34
      %s28 = sphi 0, %s26
      %s29 = sphi 0, %s27
      %s30 = sphi 0, %s28
      %s31 = sphi 0, %s29
      %s39 = sphi 0, %s39
      %s41 = sphi 0, %s39
      %s42 = sphi 0, %s41
      %s56 = sphi 0, %s42
      %s62 = sphi 0, %s64
      %s65 = sphi 0, %s62
      %s66 = sphi 0, %s65
      %s82 = sphi 0, %s66
      %s90 = sphi 0, %s92
      %s93 = sphi 0, %s90
      %s94 = sphi 0, %s93
      %s110 = sphi 0, %s94
      %s118 = sphi 0, %s120
      %s121 = sphi 0, %s118
      %s122 = sphi 0, %s121
      %s138 = sphi 0, %s122
    $region4: #{tpu_custom_call.1} parent=1 // loop_header_branch
      %22 = sbr.rel (%p20) target = $region8
    $region5: #{tpu_custom_call.1} parent=1 // loop_body
      %s24 = ssub.s32 %s19, 1
      %s25 = ssub.s32 %s19, 2
      %s32 = sadd.s32 1, %s27
      %p33 = scmp.ge.s32.totalorder %s32, 1
      %s34 = scalar_select %p33, 0, %s32
      %s35 = sadd.s32 1, %s26
      %s36 = scalar_select %p33, %s35, %s26
      %p37 = scmp.ge.s32.totalorder %s36, 2
      %s38 = scalar_select %p37, 0, %s36
      %s40 = sadd.s32 %s39, 1
      %p43 = scmp.eq.s32.totalorder %s19, 1
      %p44 = scmp.ne.s32.totalorder %s39, %s41
      %p45 = scmp.eq.s32.totalorder %s19, 0
      %p46 = por %p44, %p45
      %p47 = scmp.ne.s32.totalorder %s39, %s41
      %p48 = scmp.eq.s32.totalorder %s24, 1
      %p49 = por %p47, %p48
      %p50 = scmp.ne.s32.totalorder %s41, %s42
      %p51 = scmp.eq.s32.totalorder %s24, 0
      %p52 = por %p50, %p51
      %p53 = scmp.ne.s32.totalorder %s41, %s42
      %p54 = scmp.eq.s32.totalorder %s25, 1
      %p55 = por %p53, %p54
      %p57 = scmp.ne.s32.totalorder %s42, %s56
      %p58 = scmp.eq.s32.totalorder %s25, 0
      %p59 = por %p57, %p58
      %s60 = ssub.s32 %s27, %s34
      %p61 = scmp.eq.s32.totalorder %s60, 0
      %s63 = sadd.s32 %s62, 1
      %s64 = scalar_select %p61, %s62, %s63
      %p67 = pneg %p61
      %p68 = scmp.eq.s32.totalorder %s19, 1
      %p69 = por %p67, %p68
      %p70 = scmp.ne.s32.totalorder %s62, %s65
      %p71 = scmp.eq.s32.totalorder %s19, 0
      %p72 = por %p70, %p71
      %p73 = scmp.ne.s32.totalorder %s62, %s65
      %p74 = scmp.eq.s32.totalorder %s24, 1
      %p75 = por %p73, %p74
      %p76 = scmp.ne.s32.totalorder %s65, %s66
      %p77 = scmp.eq.s32.totalorder %s24, 0
      %p78 = por %p76, %p77
      %p79 = scmp.ne.s32.totalorder %s65, %s66
      %p80 = scmp.eq.s32.totalorder %s25, 1
      %p81 = por %p79, %p80
      %p83 = scmp.ne.s32.totalorder %s66, %s82
      %p84 = scmp.eq.s32.totalorder %s25, 0
      %p85 = por %p83, %p84
      %s86 = ssub.s32 %s26, %s38
      %s87 = ssub.s32 %s27, %s34
      %s88 = sor.u32 %s86, %s87
      %p89 = scmp.eq.s32.totalorder %s88, 0
      %s91 = sadd.s32 %s90, 1
      %s92 = scalar_select %p89, %s90, %s91
      %p95 = pneg %p89
      %p96 = scmp.eq.s32.totalorder %s19, 1
      %p97 = por %p95, %p96
      %p98 = scmp.ne.s32.totalorder %s90, %s93
      %p99 = scmp.eq.s32.totalorder %s19, 0
      %p100 = por %p98, %p99
      %p101 = scmp.ne.s32.totalorder %s90, %s93
      %p102 = scmp.eq.s32.totalorder %s24, 1
      %p103 = por %p101, %p102
      %p104 = scmp.ne.s32.totalorder %s93, %s94
      %p105 = scmp.eq.s32.totalorder %s24, 0
      %p106 = por %p104, %p105
      %p107 = scmp.ne.s32.totalorder %s93, %s94
      %p108 = scmp.eq.s32.totalorder %s25, 1
      %p109 = por %p107, %p108
      %p111 = scmp.ne.s32.totalorder %s94, %s110
      %p112 = scmp.eq.s32.totalorder %s25, 0
      %p113 = por %p111, %p112
      %s114 = ssub.s32 %s26, %s38
      %s115 = ssub.s32 %s27, %s34
      %s116 = sor.u32 %s114, %s115
      %p117 = scmp.eq.s32.totalorder %s116, 0
      %s119 = sadd.s32 %s118, 1
      %s120 = scalar_select %p117, %s118, %s119
      %p123 = pneg %p117
      %p124 = scmp.eq.s32.totalorder %s19, 1
      %p125 = por %p123, %p124
      %p126 = scmp.ne.s32.totalorder %s118, %s121
      %p127 = scmp.eq.s32.totalorder %s19, 0
      %p128 = por %p126, %p127
      %p129 = scmp.ne.s32.totalorder %s118, %s121
      %p130 = scmp.eq.s32.totalorder %s24, 1
      %p131 = por %p129, %p130
      %p132 = scmp.ne.s32.totalorder %s121, %s122
      %p133 = scmp.eq.s32.totalorder %s24, 0
      %p134 = por %p132, %p133
      %p135 = scmp.ne.s32.totalorder %s121, %s122
      %p136 = scmp.eq.s32.totalorder %s25, 1
      %p137 = por %p135, %p136
      %p139 = scmp.ne.s32.totalorder %s122, %s138
      %p140 = scmp.eq.s32.totalorder %s25, 0
      %p141 = por %p139, %p140
      %p142 = scmp.le.s32.totalorder 1, %s19
      %p143 = scmp.lt.s32.totalorder %s19, 3
      %p144 = pnand %p142, %p143
      %p145 = pneg %p144
      // Predicated region
      $region9: #{tpu_custom_call.1} parent=5 // pred_check
        _
      $region10: #{tpu_custom_call.1} parent=5 // pred_check_branch
        %147 = sbr.rel (%p144) target = $region12
      $region11: #{tpu_custom_call.1} parent=5 // pred_region
        %s148 = ssub.s32 %s19, 1
        // Predicated region
        $region13: #{tpu_custom_call.1} parent=11 // pred_check
          %p149 = pneg %p52
        $region14: #{tpu_custom_call.1} parent=11 // pred_check_branch
          %151 = sbr.rel (%p149) target = $region16
        $region15: #{tpu_custom_call.1} parent=11 // pred_region
          %s153 = ssub.s32 896, 896
          %154 = vsyncadd [#allocation5], %s153
          %s155 = sshll.u32 [#allocation4], 4
          %s156 = int_to_ptr.vmem [resolvable:$true] %s155
          %161 = dma.hbm_to_vmem [thread:$0]  %s1, 896, %s156, [#allocation5], 128, 128, 8
        $region16: #{tpu_custom_call.1} parent=11 // pred_fallthru
          _
        // Predicated region
        $region17: #{tpu_custom_call.1} parent=11 // pred_check
          %p162 = pneg %p78
        $region18: #{tpu_custom_call.1} parent=11 // pred_check_branch
          %164 = sbr.rel (%p162) target = $region20
        $region19: #{tpu_custom_call.1} parent=11 // pred_region
          %s166 = ssub.s32 128, 128
          %167 = vsyncadd [#allocation8], %s166
          %s168 = smul.addr %s29, 128
          %s169 = scalar_lea.hbm %s2, %s168
          %s171 = sshll.u32 [#allocation7], 4
          %s172 = int_to_ptr.vmem [resolvable:$true] %s171
          %174 = dma.hbm_to_vmem [thread:$0]  %s169, 128, %s172, [#allocation8]
        $region20: #{tpu_custom_call.1} parent=11 // pred_fallthru
          _
      $region12: #{tpu_custom_call.1} parent=5 // pred_fallthru
        _
      %p175 = scmp.lt.s32.totalorder %s19, 2
      // Predicated region
      $region21: #{tpu_custom_call.1} parent=5 // pred_check
        %p176 = pneg %p175
      $region22: #{tpu_custom_call.1} parent=5 // pred_check_branch
        %178 = sbr.rel (%p176) target = $region24
      $region23: #{tpu_custom_call.1} parent=5 // pred_region
        // Predicated region
        $region25: #{tpu_custom_call.1} parent=23 // pred_check
          %p179 = pneg %p100
        $region26: #{tpu_custom_call.1} parent=23 // pred_check_branch
          %181 = sbr.rel (%p179) target = $region28
        $region27: #{tpu_custom_call.1} parent=23 // pred_region
          %s182 = sand.u32 %s19, 1
          %s183 = scalar_lea.sflag [#allocation5], %s182
          %s184 = sand.u32 %s90, 1
          %s185 = smul.addr %s184, 8
          %s186 = scalar_lea.vmem [#allocation9], %s185
          %s188 = ssub.s32 128, 128
          %189 = vsyncadd %s183, %s188
          %s190 = sadd.s32 %s27, %s26
          %s191 = smul.addr %s190, 128
          %s192 = scalar_lea.hbm %s3, %s191
          %s194 = sshll.u32 %s186, 4
          %s195 = int_to_ptr.vmem [resolvable:$true] %s194
          %197 = dma.hbm_to_vmem [thread:$0]  %s192, 128, %s195, %s183
        $region28: #{tpu_custom_call.1} parent=23 // pred_fallthru
          _
      $region24: #{tpu_custom_call.1} parent=5 // pred_fallthru
        _
      %p198 = scmp.le.s32.totalorder 1, %s19
      %p199 = scmp.lt.s32.totalorder %s19, 3
      %p200 = pnand %p198, %p199
      %p201 = pneg %p200
      // Predicated region
      $region29: #{tpu_custom_call.1} parent=5 // pred_check
        _
      $region30: #{tpu_custom_call.1} parent=5 // pred_check_branch
        %203 = sbr.rel (%p200) target = $region32
      $region31: #{tpu_custom_call.1} parent=5 // pred_region
        %s204 = ssub.s32 %s19, 1
        // Predicated region
        $region33: #{tpu_custom_call.1} parent=31 // pred_check
          %p205 = pneg %p52
        $region34: #{tpu_custom_call.1} parent=31 // pred_check_branch
          %207 = sbr.rel (%p205) target = $region36
        $region35: #{tpu_custom_call.1} parent=31 // pred_region
          %208 = dma.done [#allocation5], 896
        $region36: #{tpu_custom_call.1} parent=31 // pred_fallthru
          _
        // Predicated region
        $region37: #{tpu_custom_call.1} parent=31 // pred_check
          %p209 = pneg %p78
        $region38: #{tpu_custom_call.1} parent=31 // pred_check_branch
          %211 = sbr.rel (%p209) target = $region40
        $region39: #{tpu_custom_call.1} parent=31 // pred_region
          %212 = dma.done [#allocation8], 128
        $region40: #{tpu_custom_call.1} parent=31 // pred_fallthru
          _
        %s213 = sand.u32 %s24, 1
        %s214 = scalar_lea.sflag [#allocation5], %s213
        %s215 = sand.u32 %s93, 1
        %s216 = smul.addr %s215, 8
        %s217 = scalar_lea.vmem [#allocation9], %s216
        // Predicated region
        $region41: #{tpu_custom_call.1} parent=31 // pred_check
          %p218 = pneg %p106
        $region42: #{tpu_custom_call.1} parent=31 // pred_check_branch
          %220 = sbr.rel (%p218) target = $region44
        $region43: #{tpu_custom_call.1} parent=31 // pred_region
          %221 = dma.done %s214, 128
        $region44: #{tpu_custom_call.1} parent=31 // pred_fallthru
          _
        %p222 = pneg %p52
        %p223 = pneg %p49
        %p224 = pneg %p78
        %p225 = pneg %p75
        %s226 = sand.u32 %s24, 1
        %s227 = scalar_lea.sflag [#allocation5], %s226
        %s228 = sand.u32 %s93, 1
        %s229 = smul.addr %s228, 8
        %s230 = scalar_lea.vmem [#allocation9], %s229
        %p231 = pneg %p106
        %p232 = pneg %p103
        %p233 = pneg %p134
        %p234 = pneg %p131
        %s235 = sand.u32 %s121, 1
        %s236 = scalar_lea.sflag [#allocation6], %s235
        %s237 = sand.u32 %s121, 1
        %s238 = smul.addr %s237, 8
        %s239 = scalar_lea.vmem [#allocation10], %s238
        %s240 = smul.u32 %s28, 8
        %s241 = smul.u32 %s29, 8
        %s242 = sadd.s32 %s240, %s241
        %s243 = sld [smem:[#allocation3 + %s242]]
        %s244 = scalar_lea.vmem [#allocation4], %s243
        %v245 = vld [vmem:[%s244] sm:$0x1]
        %246 = vst [vmem:[%s239] sm:$0x1] %v245
        %s247 = sadd.s32 %s242, 1
        %s248 = sld [smem:[#allocation3 + %s247]]
        %s249 = scalar_lea.vmem [#allocation4], %s248
        %v250 = vld [vmem:[%s249] sm:$0x1]
        %251 = vst [vmem:[%s239 + $0x1] sm:$0x1] %v250
        %s252 = sadd.s32 %s242, 2
        %s253 = sld [smem:[#allocation3 + %s252]]
        %s254 = scalar_lea.vmem [#allocation4], %s253
        %v255 = vld [vmem:[%s254] sm:$0x1]
        %256 = vst [vmem:[%s239 + $0x2] sm:$0x1] %v255
        %s257 = sadd.s32 %s242, 3
        %s258 = sld [smem:[#allocation3 + %s257]]
        %s259 = scalar_lea.vmem [#allocation4], %s258
        %v260 = vld [vmem:[%s259] sm:$0x1]
        %261 = vst [vmem:[%s239 + $0x3] sm:$0x1] %v260
        %s262 = sadd.s32 %s242, 4
        %s263 = sld [smem:[#allocation3 + %s262]]
        %s264 = scalar_lea.vmem [#allocation4], %s263
        %v265 = vld [vmem:[%s264] sm:$0x1]
        %266 = vst [vmem:[%s239 + $0x4] sm:$0x1] %v265
        %s267 = sadd.s32 %s242, 5
        %s268 = sld [smem:[#allocation3 + %s267]]
        %s269 = scalar_lea.vmem [#allocation4], %s268
        %v270 = vld [vmem:[%s269] sm:$0x1]
        %271 = vst [vmem:[%s239 + $0x5] sm:$0x1] %v270
        %s272 = sadd.s32 %s242, 6
        %s273 = sld [smem:[#allocation3 + %s272]]
        %s274 = scalar_lea.vmem [#allocation4], %s273
        %v275 = vld [vmem:[%s274] sm:$0x1]
        %276 = vst [vmem:[%s239 + $0x6] sm:$0x1] %v275
        %s277 = sadd.s32 %s242, 7
        %s278 = sld [smem:[#allocation3 + %s277]]
        %s279 = scalar_lea.vmem [#allocation4], %s278
        %v280 = vld [vmem:[%s279] sm:$0x1]
        %281 = vst [vmem:[%s239 + $0x7] sm:$0x1] %v280
        %v282 = vld [vmem:[%s239] sm:$0xff]
        %v283 = vmul.f32 %v282, 11.313708
        %v284 = vld [vmem:[#allocation7] sm:$0xff]
        %v285 = vadd.f32 %v283, %v284
        %v286 = vld [vmem:[%s217] sm:$0xff]
        %v287 = vmul.f32 %v285, %v286
        %288 = vst [vmem:[%s239] sm:$0xff] %v287
        %s289 = sand.u32 %s121, 1
        %s290 = scalar_lea.sflag [#allocation6], %s289
        %s291 = sand.u32 %s121, 1
        %s292 = smul.addr %s291, 8
        %s293 = scalar_lea.vmem [#allocation10], %s292
        // Predicated region
        $region45: #{tpu_custom_call.1} parent=31 // pred_check
          %p294 = pneg %p131
        $region46: #{tpu_custom_call.1} parent=31 // pred_check_branch
          %296 = sbr.rel (%p294) target = $region48
        $region47: #{tpu_custom_call.1} parent=31 // pred_region
          %s298 = ssub.s32 128, 128
          %299 = vsyncadd %s290, %s298
          %s300 = sadd.s32 %s29, %s28
          %s301 = smul.addr %s300, 128
          %s302 = scalar_lea.hbm %s4, %s301
          %s304 = sshll.u32 %s293, 4
          %s305 = int_to_ptr.vmem [resolvable:$true] %s304
          %307 = dma.vmem_to_hbm [thread:$0]  %s305, 128, %s302, %s290
        $region48: #{tpu_custom_call.1} parent=31 // pred_fallthru
          _
      $region32: #{tpu_custom_call.1} parent=5 // pred_fallthru
        _
      %p308 = scmp.le.s32.totalorder 2, %s19
      // Predicated region
      $region49: #{tpu_custom_call.1} parent=5 // pred_check
        %p309 = pneg %p308
      $region50: #{tpu_custom_call.1} parent=5 // pred_check_branch
        %311 = sbr.rel (%p309) target = $region52
      $region51: #{tpu_custom_call.1} parent=5 // pred_region
        %s312 = ssub.s32 %s19, 2
        // Predicated region
        $region53: #{tpu_custom_call.1} parent=51 // pred_check
          %p313 = pneg %p137
        $region54: #{tpu_custom_call.1} parent=51 // pred_check_branch
          %315 = sbr.rel (%p313) target = $region56
        $region55: #{tpu_custom_call.1} parent=51 // pred_region
          %s316 = sand.u32 %s122, 1
          %s317 = scalar_lea.sflag [#allocation6], %s316
          %s318 = sand.u32 %s122, 1
          %s319 = smul.addr %s318, 8
          %s320 = scalar_lea.vmem [#allocation10], %s319
          %321 = dma.done %s317, 128
        $region56: #{tpu_custom_call.1} parent=51 // pred_fallthru
          _
      $region52: #{tpu_custom_call.1} parent=5 // pred_fallthru
        _
    $region6: #{tpu_custom_call.1} parent=1 // loop_footer
      %s23 = sadd.s32 1, %s19
    $region7: #{tpu_custom_call.1} parent=1 // loop_footer_branch
      %18 = sbr.rel target = $region3
    $region8: #{tpu_custom_call.1} parent=1 // loop_exit
      _
    %322 = vsyncpa [#allocation5], 1
    %s323 = scalar_lea.sflag [#allocation5], 1
    %324 = vsyncpa %s323, 1
    %325 = vsyncpa [#allocation8], 1
    %326 = vsyncpa [#allocation6], 1
    %s327 = scalar_lea.sflag [#allocation6], 1
    %328 = vsyncpa %s327, 1

</llo_original>
